<compile_context>
chip_gen: v5e
topology: v5e:2x2
jax: 0.10.0
libtpu: 0.0.40
codegen_flags: <defaults>
</compile_context>

<pallas_src>
import math
import functools

import jax
import jax.numpy as jnp
from jax.experimental import pallas as pl
from jax.experimental.pallas import tpu as pltpu


# ---------------------------------------------------------------------------
# Pallas kernels
# ---------------------------------------------------------------------------
def _train_kernel(x_ref, wmu_ref, wsig_ref, ein_ref, eout_ref,
                  bmu_ref, bsig_ref, beps_ref, o_ref, *acc, single_k):
    """y = x@Wmu_t + eout * ((x*ein)@Wsig_t) + (bmu + bsig*beps)."""
    xv = x_ref[...]                                  # (tm, tk) compute dtype
    xs = xv * ein_ref[...]                           # fold f(eps_in) into x
    pm = jnp.dot(xv, wmu_ref[...], preferred_element_type=jnp.float32)
    ps = jnp.dot(xs, wsig_ref[...], preferred_element_type=jnp.float32)

    if single_k:
        b = bmu_ref[...] + bsig_ref[...] * beps_ref[...]          # (1, tn) f32
        o_ref[...] = (pm + eout_ref[...] * ps + b).astype(o_ref.dtype)
    else:
        accm, accs = acc
        k = pl.program_id(2)

        @pl.when(k == 0)
        def _():
            accm[...] = jnp.zeros_like(accm)
            accs[...] = jnp.zeros_like(accs)

        accm[...] += pm
        accs[...] += ps

        @pl.when(k == pl.num_programs(2) - 1)
        def _():
            b = bmu_ref[...] + bsig_ref[...] * beps_ref[...]
            o_ref[...] = (accm[...] + eout_ref[...] * accs[...] + b
                          ).astype(o_ref.dtype)


def _eval_kernel(x_ref, wmu_ref, bmu_ref, o_ref, *acc, single_k):
    """y = x @ Wmu_t + bmu."""
    pm = jnp.dot(x_ref[...], wmu_ref[...], preferred_element_type=jnp.float32)

    if single_k:
        o_ref[...] = (pm + bmu_ref[...]).astype(o_ref.dtype)
    else:
        (accm,) = acc
        k = pl.program_id(2)

        @pl.when(k == 0)
        def _():
            accm[...] = jnp.zeros_like(accm)

        accm[...] += pm

        @pl.when(k == pl.num_programs(2) - 1)
        def _():
            o_ref[...] = (accm[...] + bmu_ref[...]).astype(o_ref.dtype)


# ---------------------------------------------------------------------------
# Wrapper
# ---------------------------------------------------------------------------
def _round_up(v, m):
    return ((v + m - 1) // m) * m


def _pad_to(a, shape):
    pads = [(0, t - s) for s, t in zip(a.shape, shape)]
    if all(p == (0, 0) for p in pads):
        return a
    return jnp.pad(a, pads)


def noisy_linear_forward(x, params, training=True,
                         compute_dtype=jnp.bfloat16):
    """NoisyLinear forward (factorized noise).

    x:             (N, in_features) float32
    params:        dict from init_noisy_linear
    compute_dtype: dtype streamed into the MXU for x / weights / f(eps_in)
                   (default bf16 -> half the HBM weight bytes; accumulation,
                   bias and f(eps_out) stay f32).  Use jnp.float32 for a
                   numerically tight path.
    """
    n, in_features = x.shape
    out_features = params["weight_mu"].shape[0]
    out_dtype = x.dtype

    if n == 0:
        return jnp.zeros((0, out_features), out_dtype)

    # Tile sizes: tm multiple of 16 (valid sublane count for both f32 and
    # bf16), tn/tk multiples of 128 (lane-dense stores, MXU-shaped).
    # tn = 128 for small layers so the j axis has >=2 blocks (v7x: 2 TCs).
    tm = min(512, _round_up(n, 16))
    tn = 128 if out_features <= 256 else 256
    tk = min(1024, _round_up(in_features, 128))

    n_p = _round_up(n, tm)
    o_p = _round_up(out_features, tn)
    k_p = _round_up(in_features, tk)
    single_k = (k_p == tk)

    # Cast to compute dtype in the wrapper (bytes are halved in HBM for bf16),
    # pre-transpose weights once to (in, out) so the kernel contraction is the
    # canonical (tm,tk)@(tk,tn) with no transposed-RHS form.
    x_p = _pad_to(x.astype(compute_dtype), (n_p, k_p))
    wmu_t = _pad_to(params["weight_mu"].T.astype(compute_dtype), (k_p, o_p))
    bmu = _pad_to(params["bias_mu"].reshape(1, out_features).astype(jnp.float32),
                  (1, o_p))

    if single_k:
        grid = (n_p // tm, o_p // tn)
        x_spec = pl.BlockSpec((tm, tk), lambda i, j: (i, 0))
        w_spec = pl.BlockSpec((tk, tn), lambda i, j: (0, j))
        ein_spec = pl.BlockSpec((1, tk), lambda i, j: (0, 0))
        row_spec = pl.BlockSpec((1, tn), lambda i, j: (0, j))
        out_spec = pl.BlockSpec((tm, tn), lambda i, j: (i, j))
        dim_sem = ("parallel", "parallel")
        scratch_train = []
        scratch_eval = []
    else:
        grid = (n_p // tm, o_p // tn, k_p // tk)     # reduction axis last
        x_spec = pl.BlockSpec((tm, tk), lambda i, j, k: (i, k))
        w_spec = pl.BlockSpec((tk, tn), lambda i, j, k: (k, j))
        ein_spec = pl.BlockSpec((1, tk), lambda i, j, k: (0, k))
        row_spec = pl.BlockSpec((1, tn), lambda i, j, k: (0, j))
        out_spec = pl.BlockSpec((tm, tn), lambda i, j, k: (i, j))
        dim_sem = ("parallel", "parallel", "arbitrary")
        scratch_train = [pltpu.VMEM((tm, tn), jnp.float32),
                         pltpu.VMEM((tm, tn), jnp.float32)]
        scratch_eval = [pltpu.VMEM((tm, tn), jnp.float32)]

    # Max double-buffered working set at (tm,tn,tk)=(512,256,1024) bf16 is
    # ~6 MiB, so 32 MiB scoped VMEM is comfortably safe on v5e/v6e/v7x.
    compiler_params = pltpu.CompilerParams(
        dimension_semantics=dim_sem,
        vmem_limit_bytes=32 * 1024 * 1024)

    out_shape = jax.ShapeDtypeStruct((n_p, o_p), out_dtype)

    if training:
        wsig_t = _pad_to(params["weight_sigma"].T.astype(compute_dtype),
                         (k_p, o_p))
        ein = _pad_to(params["weight_eps_in"].reshape(1, in_features)
                      .astype(compute_dtype), (1, k_p))
        eout = _pad_to(params["weight_eps_out"].reshape(1, out_features)
                       .astype(jnp.float32), (1, o_p))
        bsig = _pad_to(params["bias_sigma"].reshape(1, out_features)
                       .astype(jnp.float32), (1, o_p))
        beps = _pad_to(params["bias_epsilon"].reshape(1, out_features)
                       .astype(jnp.float32), (1, o_p))

        y = pl.pallas_call(
            functools.partial(_train_kernel, single_k=single_k),
            out_shape=out_shape,
            grid_spec=pltpu.PrefetchScalarGridSpec(
                num_scalar_prefetch=0,
                grid=grid,
                in_specs=[x_spec, w_spec, w_spec, ein_spec, row_spec,
                          row_spec, row_spec, row_spec],
                out_specs=out_spec,
                scratch_shapes=scratch_train),
            compiler_params=compiler_params,
        )(x_p, wmu_t, wsig_t, ein, eout, bmu, bsig, beps)
    else:
        y = pl.pallas_call(
            functools.partial(_eval_kernel, single_k=single_k),
            out_shape=out_shape,
            grid_spec=pltpu.PrefetchScalarGridSpec(
                num_scalar_prefetch=0,
                grid=grid,
                in_specs=[x_spec, w_spec, row_spec],
                out_specs=out_spec,
                scratch_shapes=scratch_eval),
            compiler_params=compiler_params,
        )(x_p, wmu_t, bmu)

    return y[:n, :out_features]


# ---------------------------------------------------------------------------
# Deterministic parameter / noise initialization (mirrors reset_parameters +
# resample with factorized=True, std_init=0.4).
# ---------------------------------------------------------------------------
def _scale_noise(key, size):
    v = jax.random.normal(key, (size,), dtype=jnp.float32)
    return jnp.sign(v) * jnp.sqrt(jnp.abs(v))


def init_noisy_linear(key, in_features, out_features, std_init=0.4):
    k_wmu, k_bmu, k_ein, k_eout, k_beps = jax.random.split(key, 5)
    mu_range = 1.0 / math.sqrt(in_features)

    weight_mu = jax.random.uniform(
        k_wmu, (out_features, in_features), jnp.float32, -mu_range, mu_range)
    weight_sigma = jnp.full((out_features, in_features),
                            std_init / math.sqrt(in_features), jnp.float32)
    bias_mu = jax.random.uniform(
        k_bmu, (out_features,), jnp.float32, -mu_range, mu_range)
    bias_sigma = jnp.full((out_features,),
                          std_init / math.sqrt(out_features), jnp.float32)

    # Factorized noise: eps_w = outer(f(eps_out), f(eps_in)), eps_b = f(eps')
    eps_in = _scale_noise(k_ein, in_features)
    eps_out = _scale_noise(k_eout, out_features)
    bias_epsilon = _scale_noise(k_beps, out_features)

    return {
        "weight_mu": weight_mu,
        "weight_sigma": weight_sigma,
        "weight_eps_in": eps_in,                       # kernel consumes these
        "weight_eps_out": eps_out,
        "weight_epsilon": jnp.outer(eps_out, eps_in),  # reference check only
        "bias_mu": bias_mu,
        "bias_sigma": bias_sigma,
        "bias_epsilon": bias_epsilon,
    }


def _reference(x, params, training):
    if training:
        w = params["weight_mu"] + params["weight_sigma"] * params["weight_epsilon"]
        b = params["bias_mu"] + params["bias_sigma"] * params["bias_epsilon"]
    else:
        w = params["weight_mu"]
        b = params["bias_mu"]
    return x @ w.T + b


# ---------------------------------------------------------------------------
# Main
# ---------------------------------------------------------------------------
if __name__ == "__main__":
    key = jax.random.PRNGKey(0)
    k_p1, k_x1, k_p2, k_x2 = jax.random.split(key, 4)

    # ---- small case (module-like shapes, single-K fast path) --------------
    batch, in_features, out_features = 8, 32, 16
    params = init_noisy_linear(k_p1, in_features, out_features)
    x = jax.random.normal(k_x1, (batch, in_features), dtype=jnp.float32)

    ref_train = _reference(x, params, True)
    ref_eval = _reference(x, params, False)

    # Default path: bf16 operand streaming, f32 accumulation.
    y_train = jax.block_until_ready(noisy_linear_forward(x, params, True))
    y_eval = jax.block_until_ready(noisy_linear_forward(x, params, False))
    assert y_train.shape == (batch, out_features)
    assert y_eval.shape == (batch, out_features)
    assert jnp.allclose(y_train, ref_train, atol=5e-2, rtol=5e-2)
    assert jnp.allclose(y_eval, ref_eval, atol=5e-2, rtol=5e-2)

    # f32 operand path: tight numerical check of the algebraic refactor.
    y_f32 = jax.block_until_ready(
        noisy_linear_forward(x, params, True, compute_dtype=jnp.float32))
    assert jnp.allclose(y_f32, ref_train, atol=1e-4, rtol=1e-4)

    # ---- larger case: exercises K-accumulation grid, multi-j tiles, pad ---
    b2, in2, out2 = 96, 2048, 384
    params2 = init_noisy_linear(k_p2, in2, out2)
    x2 = jax.random.normal(k_x2, (b2, in2), dtype=jnp.float32)

    ref2_train = _reference(x2, params2, True)
    ref2_eval = _reference(x2, params2, False)

    y2_train = jax.block_until_ready(noisy_linear_forward(x2, params2, True))
    y2_eval = jax.block_until_ready(noisy_linear_forward(x2, params2, False))
    assert y2_train.shape == (b2, out2)
    assert jnp.allclose(y2_train, ref2_train, atol=5e-2, rtol=5e-2)
    assert jnp.allclose(y2_eval, ref2_eval, atol=5e-2, rtol=5e-2)

    # Tight f32 check of the multi-K accumulation path.
    y2_f32 = jax.block_until_ready(
        noisy_linear_forward(x2, params2, True, compute_dtype=jnp.float32))
    assert jnp.allclose(y2_f32, ref2_train, atol=1e-3, rtol=1e-3)

    print("KERNEL_OK")
</pallas_src>

<mosaic_0001>
module attributes {stable_mosaic.version = 11 : i64} {
  func.func @_train_kernel(%arg0: i32, %arg1: i32, %arg2: memref<16x128xbf16, #tpu.memory_space<vmem>>, %arg3: memref<128x128xbf16, #tpu.memory_space<vmem>>, %arg4: memref<128x128xbf16, #tpu.memory_space<vmem>>, %arg5: memref<1x128xbf16, #tpu.memory_space<vmem>>, %arg6: memref<1x128xf32, #tpu.memory_space<vmem>>, %arg7: memref<1x128xf32, #tpu.memory_space<vmem>>, %arg8: memref<1x128xf32, #tpu.memory_space<vmem>>, %arg9: memref<1x128xf32, #tpu.memory_space<vmem>>, %arg10: memref<16x128xf32, #tpu.memory_space<vmem>>) attributes {dimension_semantics = [#tpu.dimension_semantics<parallel>, #tpu.dimension_semantics<parallel>], iteration_bounds = array<i64: 1, 1>, scalar_prefetch = 0 : i64, scratch_operands = 0 : i64, tpu.core_type = #tpu.core_type<tc>, window_params = [{transform_indices = @transform_0, window_bounds = array<i64: 16, 128>}, {transform_indices = @transform_1, window_bounds = array<i64: 128, 128>}, {transform_indices = @transform_2, window_bounds = array<i64: 128, 128>}, {pipeline_mode = #tpu.pipeline_mode<synchronous>, transform_indices = @transform_3, window_bounds = array<i64: 1, 128>}, {transform_indices = @transform_4, window_bounds = array<i64: 1, 128>}, {transform_indices = @transform_5, window_bounds = array<i64: 1, 128>}, {transform_indices = @transform_6, window_bounds = array<i64: 1, 128>}, {transform_indices = @transform_7, window_bounds = array<i64: 1, 128>}, {transform_indices = @transform_8, window_bounds = array<i64: 16, 128>}]} {
    %c0 = arith.constant 0 : index
    %c0_0 = arith.constant 0 : index
    %0 = vector.load %arg2[%c0, %c0_0] : memref<16x128xbf16, #tpu.memory_space<vmem>>, vector<16x128xbf16>
    %c0_1 = arith.constant 0 : index
    %c0_2 = arith.constant 0 : index
    %1 = vector.load %arg5[%c0_1, %c0_2] : memref<1x128xbf16, #tpu.memory_space<vmem>>, vector<1x128xbf16>
    %2 = vector.broadcast %1 : vector<1x128xbf16> to vector<16x128xbf16>
    %3 = arith.mulf %0, %2 : vector<16x128xbf16>
    %c0_3 = arith.constant 0 : index
    %c0_4 = arith.constant 0 : index
    %4 = vector.load %arg3[%c0_3, %c0_4] : memref<128x128xbf16, #tpu.memory_space<vmem>>, vector<128x128xbf16>
    %cst = arith.constant dense<0.000000e+00> : vector<16x128xf32>
    %5 = tpu.matmul %0, %4, %cst {dimension_numbers = #tpu.dot_dimension_numbers<[1], [0], [0], [1], [0, 0, 1, 1], [], []>} : vector<16x128xbf16>, vector<128x128xbf16>, vector<16x128xf32> -> vector<16x128xf32>
    %c0_5 = arith.constant 0 : index
    %c0_6 = arith.constant 0 : index
    %6 = vector.load %arg4[%c0_5, %c0_6] : memref<128x128xbf16, #tpu.memory_space<vmem>>, vector<128x128xbf16>
    %cst_7 = arith.constant dense<0.000000e+00> : vector<16x128xf32>
    %7 = tpu.matmul %3, %6, %cst_7 {dimension_numbers = #tpu.dot_dimension_numbers<[1], [0], [0], [1], [0, 0, 1, 1], [], []>} : vector<16x128xbf16>, vector<128x128xbf16>, vector<16x128xf32> -> vector<16x128xf32>
    %c0_8 = arith.constant 0 : index
    %c0_9 = arith.constant 0 : index
    %8 = vector.load %arg7[%c0_8, %c0_9] : memref<1x128xf32, #tpu.memory_space<vmem>>, vector<1x128xf32>
    %c0_10 = arith.constant 0 : index
    %c0_11 = arith.constant 0 : index
    %9 = vector.load %arg8[%c0_10, %c0_11] : memref<1x128xf32, #tpu.memory_space<vmem>>, vector<1x128xf32>
    %c0_12 = arith.constant 0 : index
    %c0_13 = arith.constant 0 : index
    %10 = vector.load %arg9[%c0_12, %c0_13] : memref<1x128xf32, #tpu.memory_space<vmem>>, vector<1x128xf32>
    %11 = arith.mulf %9, %10 : vector<1x128xf32>
    %12 = arith.addf %8, %11 : vector<1x128xf32>
    %c0_14 = arith.constant 0 : index
    %c0_15 = arith.constant 0 : index
    %13 = vector.load %arg6[%c0_14, %c0_15] : memref<1x128xf32, #tpu.memory_space<vmem>>, vector<1x128xf32>
    %14 = vector.broadcast %13 : vector<1x128xf32> to vector<16x128xf32>
    %15 = arith.mulf %14, %7 : vector<16x128xf32>
    %16 = arith.addf %5, %15 : vector<16x128xf32>
    %17 = vector.broadcast %12 : vector<1x128xf32> to vector<16x128xf32>
    %18 = arith.addf %16, %17 : vector<16x128xf32>
    %c0_16 = arith.constant 0 : index
    %c0_17 = arith.constant 0 : index
    %19 = vector.load %arg10[%c0_16, %c0_17] : memref<16x128xf32, #tpu.memory_space<vmem>>, vector<16x128xf32>
    tpu.vector_store %arg10[%c0_16, %c0_17], %18 {strides = array<i32>} : memref<16x128xf32, #tpu.memory_space<vmem>>, vector<16x128xf32>,
    return
  }
  func.func @transform_0(%arg0: i32, %arg1: i32) -> (i32, i32) {
    %c0_i32 = arith.constant 0 : i32
    %c0_i32_0 = arith.constant 0 : i32
    return %arg0, %c0_i32 : i32, i32
  }
  func.func @transform_1(%arg0: i32, %arg1: i32) -> (i32, i32) {
    %c0_i32 = arith.constant 0 : i32
    %c0_i32_0 = arith.constant 0 : i32
    return %c0_i32, %arg1 : i32, i32
  }
  func.func @transform_2(%arg0: i32, %arg1: i32) -> (i32, i32) {
    %c0_i32 = arith.constant 0 : i32
    %c0_i32_0 = arith.constant 0 : i32
    return %c0_i32, %arg1 : i32, i32
  }
  func.func @transform_3(%arg0: i32, %arg1: i32) -> (i32, i32) {
    %c0_i32 = arith.constant 0 : i32
    %c0_i32_0 = arith.constant 0 : i32
    %c0_i32_1 = arith.constant 0 : i32
    return %c0_i32, %c0_i32_0 : i32, i32
  }
  func.func @transform_4(%arg0: i32, %arg1: i32) -> (i32, i32) {
    %c0_i32 = arith.constant 0 : i32
    %c0_i32_0 = arith.constant 0 : i32
    return %c0_i32, %arg1 : i32, i32
  }
  func.func @transform_5(%arg0: i32, %arg1: i32) -> (i32, i32) {
    %c0_i32 = arith.constant 0 : i32
    %c0_i32_0 = arith.constant 0 : i32
    return %c0_i32, %arg1 : i32, i32
  }
  func.func @transform_6(%arg0: i32, %arg1: i32) -> (i32, i32) {
    %c0_i32 = arith.constant 0 : i32
    %c0_i32_0 = arith.constant 0 : i32
    return %c0_i32, %arg1 : i32, i32
  }
  func.func @transform_7(%arg0: i32, %arg1: i32) -> (i32, i32) {
    %c0_i32 = arith.constant 0 : i32
    %c0_i32_0 = arith.constant 0 : i32
    return %c0_i32, %arg1 : i32, i32
  }
  func.func @transform_8(%arg0: i32, %arg1: i32) -> (i32, i32) {
    %c0_i32 = arith.constant 0 : i32
    return %arg0, %arg1 : i32, i32
  }
}

</mosaic_0001>

<llo_original>
// kernel: tpu_custom_call.1
$region0: #{tpu_custom_call.1}
  #allocation0 [shape = 'u32[]', space=smem, size = 0x4, offset = 0x4, fixed_abs, tag = 'smem constant byte address 0x4 - core index']
  #allocation1 [shape = 'u32[72,128]{1,0:T(1,128)}', space=vmem, size = 0x9000, scoped, tag = 'internal scratch']
  %s0 = inlined_call_operand.hbm [shape: bf16[16,128], index: 0, kind: input, shape index: {}]
  %s1 = inlined_call_operand.hbm [shape: bf16[128,128], index: 1, kind: input, shape index: {}]
  %s2 = inlined_call_operand.hbm [shape: bf16[128,128], index: 2, kind: input, shape index: {}]
  %s3 = inlined_call_operand.vmem [shape: bf16[1,128], index: 3, kind: input, shape index: {}]
  %s4 = inlined_call_operand.vmem [shape: f32[1,128], index: 4, kind: input, shape index: {}]
  %s5 = inlined_call_operand.vmem [shape: f32[1,128], index: 5, kind: input, shape index: {}]
  %s6 = inlined_call_operand.vmem [shape: f32[1,128], index: 6, kind: input, shape index: {}]
  %s7 = inlined_call_operand.vmem [shape: f32[1,128], index: 7, kind: input, shape index: {}]
  %s8 = inlined_call_operand.hbm [shape: f32[16,128], index: 8, kind: output, shape index: {}]
  %s9 = sld [smem:[#allocation0]]
  $region54: #{tpu_custom_call.1} parent=0
    _
  %s11 = ssub.s32 1, %s9
  %s12 = scalar_select 0, %s11, %s9
  $region1: #{tpu_custom_call.1} parent=0
    #allocation2 [shape = 'u8[4096]{0}', space=vmem, size = 0x1000, scoped, tag = 'input window, operand 0, single buffered']
    #allocation3 [shape = 's32[1]{0}', space=sflag, size = 0x4, scoped, tag = 'scoped memory for tpu_custom_call.1']
    #allocation4 [shape = 's32[1]{0}', space=sflag, size = 0x4, scoped, tag = 'scoped memory for tpu_custom_call.1']
    #allocation5 [shape = 'u8[32768]{0}', space=vmem, size = 0x8000, scoped, tag = 'input window, operand 1, single buffered']
    #allocation6 [shape = 's32[1]{0}', space=sflag, size = 0x4, scoped, tag = 'scoped memory for tpu_custom_call.1']
    #allocation7 [shape = 'u8[32768]{0}', space=vmem, size = 0x8000, scoped, tag = 'input window, operand 2, single buffered']
    #allocation8 [shape = 'u8[8192]{0}', space=vmem, size = 0x2000, scoped, tag = 'output window, operand 0, single buffered']
    %13 = vsyncpa [#allocation3], 0
    %14 = vsyncpa [#allocation6], 0
    %15 = vsyncpa [#allocation4], 0
    // Predicated region
    $region2: #{tpu_custom_call.1} parent=1 // pred_check
      _
    $region3: #{tpu_custom_call.1} parent=1 // pred_check_branch
      %17 = sbr.rel (0) target = $region5
    $region4: #{tpu_custom_call.1} parent=1 // pred_region
      %19 = vsyncadd [#allocation3], 0
      %s20 = sshll.u32 %s0, 4
      %s21 = int_to_ptr.hbm [resolvable:$true] %s20
      %s22 = sshll.u32 [#allocation2], 4
      %s23 = int_to_ptr.vmem [resolvable:$true] %s22
      %28 = dma.hbm_to_vmem [thread:$0]  %s21, 128, %s23, [#allocation3], 64, 64, 4
    $region5: #{tpu_custom_call.1} parent=1 // pred_fallthru
      _
    // Predicated region
    $region6: #{tpu_custom_call.1} parent=1 // pred_check
      _
    $region7: #{tpu_custom_call.1} parent=1 // pred_check_branch
      %30 = sbr.rel (0) target = $region9
    $region8: #{tpu_custom_call.1} parent=1 // pred_region
      %32 = vsyncadd [#allocation6], 0
      %s33 = sshll.u32 %s1, 4
      %s34 = int_to_ptr.hbm [resolvable:$true] %s33
      %s35 = sshll.u32 [#allocation5], 4
      %s36 = int_to_ptr.vmem [resolvable:$true] %s35
      %41 = dma.hbm_to_vmem [thread:$0]  %s34, 1024, %s36, [#allocation6], 64, 64, 4
    $region9: #{tpu_custom_call.1} parent=1 // pred_fallthru
      _
    // Predicated region
    $region10: #{tpu_custom_call.1} parent=1 // pred_check
      _
    $region11: #{tpu_custom_call.1} parent=1 // pred_check_branch
      %43 = sbr.rel (0) target = $region13
    $region12: #{tpu_custom_call.1} parent=1 // pred_region
      %45 = vsyncadd [#allocation6], 0
      %s46 = sshll.u32 %s2, 4
      %s47 = int_to_ptr.hbm [resolvable:$true] %s46
      %s48 = sshll.u32 [#allocation7], 4
      %s49 = int_to_ptr.vmem [resolvable:$true] %s48
      %54 = dma.hbm_to_vmem [thread:$0]  %s47, 1024, %s49, [#allocation6], 64, 64, 4
    $region13: #{tpu_custom_call.1} parent=1 // pred_fallthru
      _
    // Predicated region
    $region14: #{tpu_custom_call.1} parent=1 // pred_check
      _
    $region15: #{tpu_custom_call.1} parent=1 // pred_check_branch
      %56 = sbr.rel (0) target = $region17
    $region16: #{tpu_custom_call.1} parent=1 // pred_region
      _
    $region17: #{tpu_custom_call.1} parent=1 // pred_fallthru
      _
    // Predicated region
    $region18: #{tpu_custom_call.1} parent=1 // pred_check
      _
    $region19: #{tpu_custom_call.1} parent=1 // pred_check_branch
      %58 = sbr.rel (0) target = $region21
    $region20: #{tpu_custom_call.1} parent=1 // pred_region
      _
    $region21: #{tpu_custom_call.1} parent=1 // pred_fallthru
      _
    // Predicated region
    $region22: #{tpu_custom_call.1} parent=1 // pred_check
      _
    $region23: #{tpu_custom_call.1} parent=1 // pred_check_branch
      %60 = sbr.rel (0) target = $region25
    $region24: #{tpu_custom_call.1} parent=1 // pred_region
      _
    $region25: #{tpu_custom_call.1} parent=1 // pred_fallthru
      _
    // Predicated region
    $region26: #{tpu_custom_call.1} parent=1 // pred_check
      _
    $region27: #{tpu_custom_call.1} parent=1 // pred_check_branch
      %62 = sbr.rel (0) target = $region29
    $region28: #{tpu_custom_call.1} parent=1 // pred_region
      _
    $region29: #{tpu_custom_call.1} parent=1 // pred_fallthru
      _
    // Predicated region
    $region30: #{tpu_custom_call.1} parent=1 // pred_check
      _
    $region31: #{tpu_custom_call.1} parent=1 // pred_check_branch
      %64 = sbr.rel (0) target = $region33
    $region32: #{tpu_custom_call.1} parent=1 // pred_region
      _
    $region33: #{tpu_custom_call.1} parent=1 // pred_fallthru
      _
    // Predicated region
    $region34: #{tpu_custom_call.1} parent=1 // pred_check
      _
    $region35: #{tpu_custom_call.1} parent=1 // pred_check_branch
      %66 = sbr.rel (0) target = $region37
    $region36: #{tpu_custom_call.1} parent=1 // pred_region
      %68 = dma.done [#allocation3], 128
    $region37: #{tpu_custom_call.1} parent=1 // pred_fallthru
      _
    // Predicated region
    $region38: #{tpu_custom_call.1} parent=1 // pred_check
      _
    $region39: #{tpu_custom_call.1} parent=1 // pred_check_branch
      %70 = sbr.rel (0) target = $region41
    $region40: #{tpu_custom_call.1} parent=1 // pred_region
      %72 = dma.done [#allocation6], 1024
    $region41: #{tpu_custom_call.1} parent=1 // pred_fallthru
      _
    // Predicated region
    $region42: #{tpu_custom_call.1} parent=1 // pred_check
      _
    $region43: #{tpu_custom_call.1} parent=1 // pred_check_branch
      %74 = sbr.rel (0) target = $region45
    $region44: #{tpu_custom_call.1} parent=1 // pred_region
      %76 = dma.done [#allocation6], 1024
    $region45: #{tpu_custom_call.1} parent=1 // pred_fallthru
      _
    %v77 = vld [vmem:[#allocation2] sm:$0xf]
    %v78 = vld [vmem:[#allocation2 + $0x4] sm:$0xf]
    %v79 = vld [vmem:[%s3] sm:$0x1]
    %v81 = vpack.i.b16 %v79, %v79
    %v83 = vperm.slane %v81, 0
    %v84 = vunpack.c.l.bf16 %v77
    %v85 = vunpack.c.l.bf16 %v78
    %v86 = vunpack.c.l.bf16 %v83
    %v87 = vmul.f32 %v84, %v86
    %v88 = vmul.f32 %v85, %v86
    %v89 = vpack.c.bf16 %v88, %v87
    %v90 = vld [vmem:[#allocation5] sm:$0xf]
    %v91 = vld [vmem:[#allocation5 + $0x4] sm:$0xf]
    %v92 = vld [vmem:[#allocation5 + $0x8] sm:$0xf]
    %v93 = vld [vmem:[#allocation5 + $0xc] sm:$0xf]
    %v94 = vld [vmem:[#allocation5 + $0x10] sm:$0xf]
    %v95 = vld [vmem:[#allocation5 + $0x14] sm:$0xf]
    %v96 = vld [vmem:[#allocation5 + $0x18] sm:$0xf]
    %v97 = vld [vmem:[#allocation5 + $0x1c] sm:$0xf]
    %v98 = vld [vmem:[#allocation5 + $0x20] sm:$0xf]
    %v99 = vld [vmem:[#allocation5 + $0x24] sm:$0xf]
    %v100 = vld [vmem:[#allocation5 + $0x28] sm:$0xf]
    %v101 = vld [vmem:[#allocation5 + $0x2c] sm:$0xf]
    %v102 = vld [vmem:[#allocation5 + $0x30] sm:$0xf]
    %v103 = vld [vmem:[#allocation5 + $0x34] sm:$0xf]
    %v104 = vld [vmem:[#allocation5 + $0x38] sm:$0xf]
    %v105 = vld [vmem:[#allocation5 + $0x3c] sm:$0xf]
    %v106 = vld [vmem:[#allocation7] sm:$0xf]
    %v107 = vld [vmem:[#allocation7 + $0x4] sm:$0xf]
    %v108 = vld [vmem:[#allocation7 + $0x8] sm:$0xf]
    %v109 = vld [vmem:[#allocation7 + $0xc] sm:$0xf]
    %v110 = vld [vmem:[#allocation7 + $0x10] sm:$0xf]
    %v111 = vld [vmem:[#allocation7 + $0x14] sm:$0xf]
    %v112 = vld [vmem:[#allocation7 + $0x18] sm:$0xf]
    %v113 = vld [vmem:[#allocation7 + $0x1c] sm:$0xf]
    %v114 = vld [vmem:[#allocation7 + $0x20] sm:$0xf]
    %v115 = vld [vmem:[#allocation7 + $0x24] sm:$0xf]
    %v116 = vld [vmem:[#allocation7 + $0x28] sm:$0xf]
    %v117 = vld [vmem:[#allocation7 + $0x2c] sm:$0xf]
    %v118 = vld [vmem:[#allocation7 + $0x30] sm:$0xf]
    %v119 = vld [vmem:[#allocation7 + $0x34] sm:$0xf]
    %v120 = vld [vmem:[#allocation7 + $0x38] sm:$0xf]
    %v121 = vld [vmem:[#allocation7 + $0x3c] sm:$0xf]
    %v138 = vunpack.c.l.b16 %v106
    %v139 = vunpack.c.l.b16 %v107
    %v140 = vunpack.c.l.b16 %v108
    %v141 = vunpack.c.l.b16 %v109
    %v142 = vunpack.c.l.b16 %v110
    %v143 = vunpack.c.l.b16 %v111
    %v144 = vunpack.c.l.b16 %v112
    %v145 = vunpack.c.l.b16 %v113
    %v146 = vunpack.c.l.b16 %v114
    %v147 = vunpack.c.l.b16 %v115
    %v148 = vunpack.c.l.b16 %v116
    %v149 = vunpack.c.l.b16 %v117
    %v150 = vunpack.c.l.b16 %v118
    %v151 = vunpack.c.l.b16 %v119
    %v152 = vunpack.c.l.b16 %v120
    %v153 = vunpack.c.l.b16 %v121
    %v154 = vpack.c.b16 %v139, %v138
    %v155 = vpack.c.b16 %v141, %v140
    %v156 = vpack.c.b16 %v143, %v142
    %v157 = vpack.c.b16 %v145, %v144
    %v158 = vpack.c.b16 %v147, %v146
    %v159 = vpack.c.b16 %v149, %v148
    %v160 = vpack.c.b16 %v151, %v150
    %v161 = vpack.c.b16 %v153, %v152
    %170 = vmatpush.bf16.msra.mxu0 %v161
    %171 = vmatpush.bf16.msra.mxu0 %v160
    %172 = vmatpush.bf16.msra.mxu0 %v159
    %173 = vmatpush.bf16.msra.mxu0 %v158
    %174 = vmatpush.bf16.msra.mxu0 %v157
    %175 = vmatpush.bf16.msra.mxu0 %v156
    %176 = vmatpush.bf16.msra.mxu0 %v155
    %177 = vmatpush.bf16.msra.mxu0 %v154
    %178 = vmatmul.bf16.gmra.mxu0 %v89
    %v179 = vpop.f32.mrf.mxu0
    %v180 = vadd.f32 0.0, %v179
    %v181 = vpop.f32.mrf.mxu0
    %v182 = vadd.f32 0.0, %v181
    %183 = vdwg.mxu0
    %v184 = vld [vmem:[%s5] sm:$0x1]
    %v185 = vld [vmem:[%s6] sm:$0x1]
    %v186 = vld [vmem:[%s7] sm:$0x1]
    %v187 = vmul.f32 %v185, %v186
    %v188 = vadd.f32 %v184, %v187
    %v189 = vld [vmem:[%s4] sm:$0x1]
    %v191 = vperm.slane %v189, 0
    %v193 = vmul.f32 %v191, %v180
    %v194 = vmul.f32 %v191, %v182
    %v197 = vunpack.c.l.b16 %v77
    %v198 = vunpack.c.l.b16 %v78
    %v199 = vpack.c.b16 %v198, %v197
    %v217 = vunpack.c.l.b16 %v90
    %v218 = vunpack.c.l.b16 %v91
    %v219 = vunpack.c.l.b16 %v92
    %v220 = vunpack.c.l.b16 %v93
    %v221 = vunpack.c.l.b16 %v94
    %v222 = vunpack.c.l.b16 %v95
    %v223 = vunpack.c.l.b16 %v96
    %v224 = vunpack.c.l.b16 %v97
    %v225 = vunpack.c.l.b16 %v98
    %v226 = vunpack.c.l.b16 %v99
    %v227 = vunpack.c.l.b16 %v100
    %v228 = vunpack.c.l.b16 %v101
    %v229 = vunpack.c.l.b16 %v102
    %v230 = vunpack.c.l.b16 %v103
    %v231 = vunpack.c.l.b16 %v104
    %v232 = vunpack.c.l.b16 %v105
    %v233 = vpack.c.b16 %v218, %v217
    %v234 = vpack.c.b16 %v220, %v219
    %v235 = vpack.c.b16 %v222, %v221
    %v236 = vpack.c.b16 %v224, %v223
    %v237 = vpack.c.b16 %v226, %v225
    %v238 = vpack.c.b16 %v228, %v227
    %v239 = vpack.c.b16 %v230, %v229
    %v240 = vpack.c.b16 %v232, %v231
    %249 = vmatpush.bf16.msra.mxu0 %v240
    %250 = vmatpush.bf16.msra.mxu0 %v239
    %251 = vmatpush.bf16.msra.mxu0 %v238
    %252 = vmatpush.bf16.msra.mxu0 %v237
    %253 = vmatpush.bf16.msra.mxu0 %v236
    %254 = vmatpush.bf16.msra.mxu0 %v235
    %255 = vmatpush.bf16.msra.mxu0 %v234
    %256 = vmatpush.bf16.msra.mxu0 %v233
    %257 = vmatmul.bf16.gmra.mxu0 %v199
    %v258 = vpop.f32.mrf.mxu0
    %v259 = vadd.f32 %v193, %v258
    %v260 = vpop.f32.mrf.mxu0
    %v261 = vadd.f32 %v194, %v260
    %262 = vdwg.mxu0
    %v264 = vperm.slane %v188, 0
    %v266 = vadd.f32 %v259, %v264
    %v267 = vadd.f32 %v261, %v264
    %268 = vst [vmem:[#allocation8] sm:$0xff] %v266
    %269 = vst [vmem:[#allocation8 + $0x8] sm:$0xff] %v267
    // Predicated region
    $region46: #{tpu_custom_call.1} parent=1 // pred_check
      _
    $region47: #{tpu_custom_call.1} parent=1 // pred_check_branch
      %271 = sbr.rel (0) target = $region49
    $region48: #{tpu_custom_call.1} parent=1 // pred_region
      %273 = vsyncadd [#allocation4], 0
      %s274 = sshll.u32 [#allocation8], 4
      %s275 = int_to_ptr.vmem [resolvable:$true] %s274
      %s276 = sshll.u32 %s8, 4
      %s277 = int_to_ptr.hbm [resolvable:$true] %s276
      %282 = dma.vmem_to_hbm [thread:$0]  %s275, 256, %s277, [#allocation4], 128, 128, 8
    $region49: #{tpu_custom_call.1} parent=1 // pred_fallthru
      _
    // Predicated region
    $region50: #{tpu_custom_call.1} parent=1 // pred_check
      _
    $region51: #{tpu_custom_call.1} parent=1 // pred_check_branch
      %284 = sbr.rel (0) target = $region53
    $region52: #{tpu_custom_call.1} parent=1 // pred_region
      %286 = dma.done [#allocation4], 256
    $region53: #{tpu_custom_call.1} parent=1 // pred_fallthru
      _
    %287 = vsyncpa [#allocation3], 1
    %288 = vsyncpa [#allocation6], 1
    %289 = vsyncpa [#allocation4], 1

</llo_original>
